<compile_context>
chip_gen: v6e
topology: v6e:2x2x1
jax: 0.10.0
libtpu: 0.0.40
codegen_flags: <defaults>
</compile_context>

<pallas_src>
import jax
import jax.numpy as jnp
from jax.experimental import pallas as pl
from jax.experimental.pallas import tpu as pltpu

EPS = 1e-5


# ----------------------------- Mish variants ------------------------------ #

def _mish_kernel(x):
    """mish(x) = x * tanh(softplus(x)) = x * ((1+e^x)^2 - 1) / ((1+e^x)^2 + 1).

    One EUP exp + one approx reciprocal; the rest is VPU work. The clamp at 20
    keeps (1+e)^2 finite; for x > 20 tanh(softplus(x)) == 1 in f32 anyway.
    """
    e = jnp.exp(jnp.minimum(x, 20.0))
    q = (1.0 + e) * (1.0 + e)
    return x * (q - 1.0) * pl.reciprocal(q + 1.0, approx=True)


def _mish_ref(x):
    """Reference Mish (faithful softplus + tanh)."""
    sp = jnp.maximum(x, 0.0) + jnp.log1p(jnp.exp(-jnp.abs(x)))
    return x * jnp.tanh(sp)


# ------------------------------- kernel ------------------------------------ #

def head_kernel(
    x_ref,        # (TILE_N, nc, HW)  f32
    w1m_ref,      # (nc, 512)         bf16  (BN1-folded, rows for max-pool half)
    w1a_ref,      # (nc, 512)         bf16  (BN1-folded, rows for avg-pool half)
    b1_ref,       # (1, 512)          f32   (BN1-folded)
    w2_ref,       # (512, n_pad)      bf16  (BN2-folded, lane-padded)
    b2_ref,       # (1, n_pad)        f32   (BN2-folded, lane-padded)
    o_ref,        # (TILE_N, n_pad)   f32
):
    x = x_ref[...]                                   # (T, nc, HW) f32

    # --- AdaptiveConcatPool2d (kept split; no lane concatenate needed) ---
    mx = jnp.max(x, axis=-1)                         # (T, nc)
    av = jnp.mean(x, axis=-1)                        # (T, nc)

    # --- Mish (f32 elementwise), then bf16 into the MXU ---
    hm = _mish_kernel(mx).astype(jnp.bfloat16)
    ha = _mish_kernel(av).astype(jnp.bfloat16)

    # --- [BN1 folded] Linear(2*nc -> 512): two dots, same f32 accumulator ---
    h = (jnp.dot(hm, w1m_ref[...], preferred_element_type=jnp.float32)
         + jnp.dot(ha, w1a_ref[...], preferred_element_type=jnp.float32)
         + b1_ref[...])                              # (T, 512) f32

    # --- Mish ---
    h = _mish_kernel(h).astype(jnp.bfloat16)

    # --- [BN2 folded] Linear(512 -> n_pad) ---
    out = jnp.dot(h, w2_ref[...], preferred_element_type=jnp.float32) + b2_ref[...]
    o_ref[...] = out.astype(o_ref.dtype)


# ------------------------------- wrapper ----------------------------------- #

def _choose_tile_n(N, nc, hw, target_bytes=2 << 20):
    """Pick a batch tile so the x tile is ~2 MiB, multiple of 8."""
    per_row = nc * hw * 4                       # f32 bytes per batch row of x
    t = max(8, min(512, target_bytes // max(per_row, 1)))
    t = (int(t) // 8) * 8
    n8 = -(-N // 8) * 8                         # don't exceed the padded batch
    return int(max(8, min(t, n8)))


def head_forward(x, params, *, eps=EPS):
    """x: (N, nc, H, W) float32 (NCHW). Returns (N, n) float32."""
    N, nc, H, W = x.shape
    hw = H * W
    x_flat = x.reshape(N, nc, hw).astype(jnp.float32)

    # --- fold inference-mode BatchNorms into the Linear layers (host, f32) ---
    s1 = params["bn1_gamma"] * jax.lax.rsqrt(params["bn1_var"] + eps)   # (1, 2nc)
    t1 = params["bn1_beta"] - params["bn1_mean"] * s1
    w1f = params["w1"] * s1.reshape(-1, 1)                              # (2nc, 512)
    b1f = params["b1"] + t1 @ params["w1"]                              # (1, 512)

    s2 = params["bn2_gamma"] * jax.lax.rsqrt(params["bn2_var"] + eps)   # (1, 512)
    t2 = params["bn2_beta"] - params["bn2_mean"] * s2
    w2f = params["w2"] * s2.reshape(-1, 1)                              # (512, n)
    b2f = params["b2"] + t2 @ params["w2"]                              # (1, n)

    hidden = w1f.shape[1]
    n_out = w2f.shape[1]

    # split first weight into max/avg halves; bf16 for the MXU
    w1_max = w1f[:nc].astype(jnp.bfloat16)                              # (nc, 512)
    w1_avg = w1f[nc:].astype(jnp.bfloat16)                              # (nc, 512)

    # pad output lanes to a multiple of 128 (dense stores); slice after
    n_pad = -(-n_out // 128) * 128
    w2p = jnp.zeros((hidden, n_pad), jnp.bfloat16).at[:, :n_out].set(
        w2f.astype(jnp.bfloat16))
    b2p = jnp.zeros((1, n_pad), jnp.float32).at[:, :n_out].set(
        b2f.astype(jnp.float32))

    # --- batch tiling ---
    tile_n = _choose_tile_n(N, nc, hw)
    n_batch = -(-N // tile_n) * tile_n
    if n_batch != N:
        x_flat = jnp.pad(x_flat, ((0, n_batch - N), (0, 0), (0, 0)))
    grid = (n_batch // tile_n,)

    cost = pl.CostEstimate(
        flops=2 * n_batch * (2 * nc * hidden + hidden * n_pad)
              + 2 * n_batch * nc * hw,
        transcendentals=2 * n_batch * (2 * nc + hidden),
        bytes_accessed=(x_flat.size * 4
                        + (w1_max.size + w1_avg.size + w2p.size) * 2
                        + (b1f.size + b2p.size) * 4
                        + n_batch * n_pad * 4),
    )

    out = pl.pallas_call(
        head_kernel,
        out_shape=jax.ShapeDtypeStruct((n_batch, n_pad), jnp.float32),
        grid_spec=pltpu.PrefetchScalarGridSpec(
            num_scalar_prefetch=0,
            grid=grid,
            in_specs=[
                pl.BlockSpec((tile_n, nc, hw), lambda i: (i, 0, 0)),   # x tile
                pl.BlockSpec((nc, hidden), lambda i: (0, 0)),          # w1_max (resident)
                pl.BlockSpec((nc, hidden), lambda i: (0, 0)),          # w1_avg (resident)
                pl.BlockSpec((1, hidden), lambda i: (0, 0)),           # b1     (resident)
                pl.BlockSpec((hidden, n_pad), lambda i: (0, 0)),       # w2     (resident)
                pl.BlockSpec((1, n_pad), lambda i: (0, 0)),            # b2     (resident)
            ],
            out_specs=pl.BlockSpec((tile_n, n_pad), lambda i: (i, 0)),
        ),
        compiler_params=pltpu.CompilerParams(
            dimension_semantics=("parallel",),
        ),
        cost_estimate=cost,
    )(x_flat, w1_max, w1_avg, b1f.astype(jnp.float32), w2p, b2p)

    return out[:N, :n_out]


# --------------------------- params / reference ---------------------------- #

def make_params(key, nc, n, hidden=512):
    """Parameter init matching the module shapes. BN running stats are given
    non-trivial values so the BN-folding path is actually exercised."""
    d_in = 2 * nc
    k1, k2, k3, k4, k5, k6, k7, k8, k9, k10 = jax.random.split(key, 10)
    lim1 = 1.0 / jnp.sqrt(d_in)
    lim2 = 1.0 / jnp.sqrt(hidden)
    return {
        "bn1_gamma": jax.random.uniform(k3, (1, d_in), jnp.float32, 0.5, 1.5),
        "bn1_beta":  0.1 * jax.random.normal(k4, (1, d_in), jnp.float32),
        "bn1_mean":  0.1 * jax.random.normal(k5, (1, d_in), jnp.float32),
        "bn1_var":   jax.random.uniform(k6, (1, d_in), jnp.float32, 0.5, 1.5),
        "w1": jax.random.uniform(k1, (d_in, hidden), jnp.float32, -lim1, lim1),
        "b1": jnp.zeros((1, hidden), jnp.float32),
        "bn2_gamma": jax.random.uniform(k7, (1, hidden), jnp.float32, 0.5, 1.5),
        "bn2_beta":  0.1 * jax.random.normal(k8, (1, hidden), jnp.float32),
        "bn2_mean":  0.1 * jax.random.normal(k9, (1, hidden), jnp.float32),
        "bn2_var":   jax.random.uniform(k10, (1, hidden), jnp.float32, 0.5, 1.5),
        "w2": jax.random.uniform(k2, (hidden, n), jnp.float32, -lim2, lim2),
        "b2": jnp.zeros((1, n), jnp.float32),
    }


def head_reference(x, params):
    """Pure-JAX (f32) reference of the PyTorch eval-mode forward."""
    N, nc, H, W = x.shape
    xf = x.reshape(N, nc, H * W)
    pooled = jnp.concatenate([jnp.max(xf, -1), jnp.mean(xf, -1)], axis=-1)
    h = _mish_ref(pooled)
    h = (h - params["bn1_mean"]) * jax.lax.rsqrt(params["bn1_var"] + EPS) \
        * params["bn1_gamma"] + params["bn1_beta"]
    h = h @ params["w1"] + params["b1"]
    h = _mish_ref(h)
    h = (h - params["bn2_mean"]) * jax.lax.rsqrt(params["bn2_var"] + EPS) \
        * params["bn2_gamma"] + params["bn2_beta"]
    return h @ params["w2"] + params["b2"]


if __name__ == "__main__":
    key = jax.random.PRNGKey(0)
    kx, kp = jax.random.split(key)

    N, nc, H, W, n_out = 2, 4, 16, 16, 8
    x = jax.random.normal(kx, (N, nc, H, W), jnp.float32)   # NCHW
    params = make_params(kp, nc, n_out)

    out = jax.block_until_ready(head_forward(x, params))
    ref = head_reference(x, params)

    assert out.shape == (N, n_out)
    # bf16 MXU inputs + approx reciprocal in Mish -> compare vs f32 reference
    # with a tolerance appropriate for bf16 matmul inputs.
    assert jnp.allclose(out, ref, atol=2e-2, rtol=2e-2), \
        f"mismatch vs reference, max|diff|={float(jnp.max(jnp.abs(out - ref)))}"

    print("KERNEL_OK")
</pallas_src>

<mosaic_0001>
module attributes {stable_mosaic.version = 11 : i64} {
  func.func @head_kernel(%arg0: i32, %arg1: memref<8x4x256xf32, #tpu.memory_space<vmem>>, %arg2: memref<4x512xbf16, #tpu.memory_space<vmem>>, %arg3: memref<4x512xbf16, #tpu.memory_space<vmem>>, %arg4: memref<1x512xf32, #tpu.memory_space<vmem>>, %arg5: memref<512x128xbf16, #tpu.memory_space<vmem>>, %arg6: memref<1x128xf32, #tpu.memory_space<vmem>>, %arg7: memref<8x128xf32, #tpu.memory_space<vmem>>) attributes {dimension_semantics = [#tpu.dimension_semantics<parallel>], iteration_bounds = array<i64: 1>, scalar_prefetch = 0 : i64, scratch_operands = 0 : i64, tpu.core_type = #tpu.core_type<tc>, window_params = [{transform_indices = @transform_0, window_bounds = array<i64: 8, 4, 256>}, {pipeline_mode = #tpu.pipeline_mode<synchronous>, transform_indices = @transform_1, window_bounds = array<i64: 4, 512>}, {pipeline_mode = #tpu.pipeline_mode<synchronous>, transform_indices = @transform_2, window_bounds = array<i64: 4, 512>}, {pipeline_mode = #tpu.pipeline_mode<synchronous>, transform_indices = @transform_3, window_bounds = array<i64: 1, 512>}, {pipeline_mode = #tpu.pipeline_mode<synchronous>, transform_indices = @transform_4, window_bounds = array<i64: 512, 128>}, {pipeline_mode = #tpu.pipeline_mode<synchronous>, transform_indices = @transform_5, window_bounds = array<i64: 1, 128>}, {transform_indices = @transform_6, window_bounds = array<i64: 8, 128>}]} {
    %c0 = arith.constant 0 : index
    %c0_0 = arith.constant 0 : index
    %c0_1 = arith.constant 0 : index
    %0 = vector.load %arg1[%c0, %c0_0, %c0_1] : memref<8x4x256xf32, #tpu.memory_space<vmem>>, vector<8x4x256xf32>
    %cst = arith.constant dense<0xFF800000> : vector<8x4xf32>
    %1 = vector.multi_reduction <maximumf>, %0, %cst [2] : vector<8x4x256xf32> to vector<8x4xf32>
    %cst_2 = arith.constant dense<0.000000e+00> : vector<8x4xf32>
    %2 = vector.multi_reduction <add>, %0, %cst_2 [2] : vector<8x4x256xf32> to vector<8x4xf32>
    %cst_3 = arith.constant 2.560000e+02 : f32
    %3 = vector.broadcast %cst_3 : f32 to vector<8x4xf32>
    %4 = arith.divf %2, %3 : vector<8x4xf32>
    %cst_4 = arith.constant 2.000000e+01 : f32
    %5 = vector.broadcast %cst_4 : f32 to vector<8x4xf32>
    %6 = arith.minimumf %1, %5 : vector<8x4xf32>
    %7 = math.exp %6 : vector<8x4xf32>
    %cst_5 = arith.constant 1.000000e+00 : f32
    %8 = vector.broadcast %cst_5 : f32 to vector<8x4xf32>
    %9 = arith.addf %8, %7 : vector<8x4xf32>
    %cst_6 = arith.constant 1.000000e+00 : f32
    %10 = vector.broadcast %cst_6 : f32 to vector<8x4xf32>
    %11 = arith.addf %10, %7 : vector<8x4xf32>
    %12 = arith.mulf %9, %11 : vector<8x4xf32>
    %cst_7 = arith.constant 1.000000e+00 : f32
    %13 = vector.broadcast %cst_7 : f32 to vector<8x4xf32>
    %14 = arith.subf %12, %13 : vector<8x4xf32>
    %15 = arith.mulf %1, %14 : vector<8x4xf32>
    %cst_8 = arith.constant 1.000000e+00 : f32
    %16 = vector.broadcast %cst_8 : f32 to vector<8x4xf32>
    %17 = arith.addf %12, %16 : vector<8x4xf32>
    %18 = tpu.reciprocal %17 {approx = true} : vector<8x4xf32> -> vector<8x4xf32>
    %19 = arith.mulf %15, %18 : vector<8x4xf32>
    %20 = arith.truncf %19 : vector<8x4xf32> to vector<8x4xbf16>
    %cst_9 = arith.constant 2.000000e+01 : f32
    %21 = vector.broadcast %cst_9 : f32 to vector<8x4xf32>
    %22 = arith.minimumf %4, %21 : vector<8x4xf32>
    %23 = math.exp %22 : vector<8x4xf32>
    %cst_10 = arith.constant 1.000000e+00 : f32
    %24 = vector.broadcast %cst_10 : f32 to vector<8x4xf32>
    %25 = arith.addf %24, %23 : vector<8x4xf32>
    %cst_11 = arith.constant 1.000000e+00 : f32
    %26 = vector.broadcast %cst_11 : f32 to vector<8x4xf32>
    %27 = arith.addf %26, %23 : vector<8x4xf32>
    %28 = arith.mulf %25, %27 : vector<8x4xf32>
    %cst_12 = arith.constant 1.000000e+00 : f32
    %29 = vector.broadcast %cst_12 : f32 to vector<8x4xf32>
    %30 = arith.subf %28, %29 : vector<8x4xf32>
    %31 = arith.mulf %4, %30 : vector<8x4xf32>
    %cst_13 = arith.constant 1.000000e+00 : f32
    %32 = vector.broadcast %cst_13 : f32 to vector<8x4xf32>
    %33 = arith.addf %28, %32 : vector<8x4xf32>
    %34 = tpu.reciprocal %33 {approx = true} : vector<8x4xf32> -> vector<8x4xf32>
    %35 = arith.mulf %31, %34 : vector<8x4xf32>
    %36 = arith.truncf %35 : vector<8x4xf32> to vector<8x4xbf16>
    %c0_14 = arith.constant 0 : index
    %c0_15 = arith.constant 0 : index
    %37 = vector.load %arg2[%c0_14, %c0_15] : memref<4x512xbf16, #tpu.memory_space<vmem>>, vector<4x512xbf16>
    %cst_16 = arith.constant dense<0.000000e+00> : vector<8x512xf32>
    %38 = tpu.matmul %20, %37, %cst_16 {dimension_numbers = #tpu.dot_dimension_numbers<[1], [0], [0], [1], [0, 0, 1, 1], [], []>} : vector<8x4xbf16>, vector<4x512xbf16>, vector<8x512xf32> -> vector<8x512xf32>
    %c0_17 = arith.constant 0 : index
    %c0_18 = arith.constant 0 : index
    %39 = vector.load %arg3[%c0_17, %c0_18] : memref<4x512xbf16, #tpu.memory_space<vmem>>, vector<4x512xbf16>
    %cst_19 = arith.constant dense<0.000000e+00> : vector<8x512xf32>
    %40 = tpu.matmul %36, %39, %cst_19 {dimension_numbers = #tpu.dot_dimension_numbers<[1], [0], [0], [1], [0, 0, 1, 1], [], []>} : vector<8x4xbf16>, vector<4x512xbf16>, vector<8x512xf32> -> vector<8x512xf32>
    %41 = arith.addf %38, %40 : vector<8x512xf32>
    %c0_20 = arith.constant 0 : index
    %c0_21 = arith.constant 0 : index
    %42 = vector.load %arg4[%c0_20, %c0_21] : memref<1x512xf32, #tpu.memory_space<vmem>>, vector<1x512xf32>
    %43 = vector.broadcast %42 : vector<1x512xf32> to vector<8x512xf32>
    %44 = arith.addf %41, %43 : vector<8x512xf32>
    %cst_22 = arith.constant 2.000000e+01 : f32
    %45 = vector.broadcast %cst_22 : f32 to vector<8x512xf32>
    %46 = arith.minimumf %44, %45 : vector<8x512xf32>
    %47 = math.exp %46 : vector<8x512xf32>
    %cst_23 = arith.constant 1.000000e+00 : f32
    %48 = vector.broadcast %cst_23 : f32 to vector<8x512xf32>
    %49 = arith.addf %48, %47 : vector<8x512xf32>
    %cst_24 = arith.constant 1.000000e+00 : f32
    %50 = vector.broadcast %cst_24 : f32 to vector<8x512xf32>
    %51 = arith.addf %50, %47 : vector<8x512xf32>
    %52 = arith.mulf %49, %51 : vector<8x512xf32>
    %cst_25 = arith.constant 1.000000e+00 : f32
    %53 = vector.broadcast %cst_25 : f32 to vector<8x512xf32>
    %54 = arith.subf %52, %53 : vector<8x512xf32>
    %55 = arith.mulf %44, %54 : vector<8x512xf32>
    %cst_26 = arith.constant 1.000000e+00 : f32
    %56 = vector.broadcast %cst_26 : f32 to vector<8x512xf32>
    %57 = arith.addf %52, %56 : vector<8x512xf32>
    %58 = tpu.reciprocal %57 {approx = true} : vector<8x512xf32> -> vector<8x512xf32>
    %59 = arith.mulf %55, %58 : vector<8x512xf32>
    %60 = arith.truncf %59 : vector<8x512xf32> to vector<8x512xbf16>
    %c0_27 = arith.constant 0 : index
    %c0_28 = arith.constant 0 : index
    %61 = vector.load %arg5[%c0_27, %c0_28] : memref<512x128xbf16, #tpu.memory_space<vmem>>, vector<512x128xbf16>
    %cst_29 = arith.constant dense<0.000000e+00> : vector<8x128xf32>
    %62 = tpu.matmul %60, %61, %cst_29 {dimension_numbers = #tpu.dot_dimension_numbers<[1], [0], [0], [1], [0, 0, 1, 1], [], []>} : vector<8x512xbf16>, vector<512x128xbf16>, vector<8x128xf32> -> vector<8x128xf32>
    %c0_30 = arith.constant 0 : index
    %c0_31 = arith.constant 0 : index
    %63 = vector.load %arg6[%c0_30, %c0_31] : memref<1x128xf32, #tpu.memory_space<vmem>>, vector<1x128xf32>
    %64 = vector.broadcast %63 : vector<1x128xf32> to vector<8x128xf32>
    %65 = arith.addf %62, %64 : vector<8x128xf32>
    %c0_32 = arith.constant 0 : index
    %c0_33 = arith.constant 0 : index
    %66 = vector.load %arg7[%c0_32, %c0_33] : memref<8x128xf32, #tpu.memory_space<vmem>>, vector<8x128xf32>
    tpu.vector_store %arg7[%c0_32, %c0_33], %65 {strides = array<i32>} : memref<8x128xf32, #tpu.memory_space<vmem>>, vector<8x128xf32>,
    return
  }
  func.func @transform_0(%arg0: i32) -> (i32, i32, i32) {
    %c0_i32 = arith.constant 0 : i32
    %c0_i32_0 = arith.constant 0 : i32
    %c0_i32_1 = arith.constant 0 : i32
    return %arg0, %c0_i32, %c0_i32_0 : i32, i32, i32
  }
  func.func @transform_1(%arg0: i32) -> (i32, i32) {
    %c0_i32 = arith.constant 0 : i32
    %c0_i32_0 = arith.constant 0 : i32
    %c0_i32_1 = arith.constant 0 : i32
    return %c0_i32, %c0_i32_0 : i32, i32
  }
  func.func @transform_2(%arg0: i32) -> (i32, i32) {
    %c0_i32 = arith.constant 0 : i32
    %c0_i32_0 = arith.constant 0 : i32
    %c0_i32_1 = arith.constant 0 : i32
    return %c0_i32, %c0_i32_0 : i32, i32
  }
  func.func @transform_3(%arg0: i32) -> (i32, i32) {
    %c0_i32 = arith.constant 0 : i32
    %c0_i32_0 = arith.constant 0 : i32
    %c0_i32_1 = arith.constant 0 : i32
    return %c0_i32, %c0_i32_0 : i32, i32
  }
  func.func @transform_4(%arg0: i32) -> (i32, i32) {
    %c0_i32 = arith.constant 0 : i32
    %c0_i32_0 = arith.constant 0 : i32
    %c0_i32_1 = arith.constant 0 : i32
    return %c0_i32, %c0_i32_0 : i32, i32
  }
  func.func @transform_5(%arg0: i32) -> (i32, i32) {
    %c0_i32 = arith.constant 0 : i32
    %c0_i32_0 = arith.constant 0 : i32
    %c0_i32_1 = arith.constant 0 : i32
    return %c0_i32, %c0_i32_0 : i32, i32
  }
  func.func @transform_6(%arg0: i32) -> (i32, i32) {
    %c0_i32 = arith.constant 0 : i32
    %c0_i32_0 = arith.constant 0 : i32
    return %arg0, %c0_i32 : i32, i32
  }
}

</mosaic_0001>

<llo_original>
// kernel: tpu_custom_call.1
$region0: #{tpu_custom_call.1}
  #allocation0 [shape = 'u32[]', space=smem, size = 0x4, offset = 0x4, fixed_abs, tag = 'smem constant byte address 0x4 - core index']
  #allocation1 [shape = 'u32[144,128]{1,0:T(1,128)}', space=vmem, size = 0x12000, scoped, tag = 'internal scratch']
  %s0 = inlined_call_operand.hbm [shape: f32[8,4,256], index: 0, kind: input, shape index: {}]
  %s1 = inlined_call_operand.hbm [shape: bf16[4,512], index: 1, kind: input, shape index: {}]
  %s2 = inlined_call_operand.hbm [shape: bf16[4,512], index: 2, kind: input, shape index: {}]
  %s3 = inlined_call_operand.vmem [shape: f32[1,512], index: 3, kind: input, shape index: {}]
  %s4 = inlined_call_operand.hbm [shape: bf16[512,128], index: 4, kind: input, shape index: {}]
  %s5 = inlined_call_operand.vmem [shape: f32[1,128], index: 5, kind: input, shape index: {}]
  %s6 = inlined_call_operand.hbm [shape: f32[8,128], index: 6, kind: output, shape index: {}]
  %s7 = sld [smem:[#allocation0]]
  $region50: #{tpu_custom_call.1} parent=0
    _
  %s9 = ssub.s32 1, %s7
  %s10 = scalar_select 0, %s9, %s7
  $region1: #{tpu_custom_call.1} parent=0
    #allocation2 [shape = 'u8[32768]{0}', space=vmem, size = 0x8000, scoped, tag = 'input window, operand 0, single buffered']
    #allocation3 [shape = 's32[1]{0}', space=sflag, size = 0x4, scoped, tag = 'scoped memory for tpu_custom_call.1']
    #allocation4 [shape = 's32[1]{0}', space=sflag, size = 0x4, scoped, tag = 'scoped memory for tpu_custom_call.1']
    #allocation5 [shape = 'u8[4096]{0}', space=vmem, size = 0x1000, scoped, tag = 'input window, operand 1, single buffered']
    #allocation6 [shape = 's32[1]{0}', space=sflag, size = 0x4, scoped, tag = 'scoped memory for tpu_custom_call.1']
    #allocation7 [shape = 'u8[4096]{0}', space=vmem, size = 0x1000, scoped, tag = 'input window, operand 2, single buffered']
    #allocation8 [shape = 'u8[131072]{0}', space=vmem, size = 0x20000, scoped, tag = 'input window, operand 4, single buffered']
    #allocation9 [shape = 's32[1]{0}', space=sflag, size = 0x4, scoped, tag = 'scoped memory for tpu_custom_call.1']
    #allocation10 [shape = 'u8[4096]{0}', space=vmem, size = 0x1000, scoped, tag = 'output window, operand 0, single buffered']
    %11 = vsyncpa [#allocation3], 0
    %12 = vsyncpa [#allocation6], 0
    %13 = vsyncpa [#allocation9], 0
    %14 = vsyncpa [#allocation4], 0
    // Predicated region
    $region2: #{tpu_custom_call.1} parent=1 // pred_check
      _
    $region3: #{tpu_custom_call.1} parent=1 // pred_check_branch
      %16 = sbr.rel (0) target = $region5
    $region4: #{tpu_custom_call.1} parent=1 // pred_region
      %s18 = ssub.s32 1024, 1024
      %19 = vsyncadd [#allocation3], %s18
      %s20 = sshll.u32 [#allocation2], 4
      %s21 = int_to_ptr.vmem [resolvable:$true] %s20
      %26 = dma.hbm_to_vmem [thread:$0]  %s0, 1024, %s21, [#allocation3], 128, 128, 8
    $region5: #{tpu_custom_call.1} parent=1 // pred_fallthru
      _
    // Predicated region
    $region6: #{tpu_custom_call.1} parent=1 // pred_check
      _
    $region7: #{tpu_custom_call.1} parent=1 // pred_check_branch
      %28 = sbr.rel (0) target = $region9
    $region8: #{tpu_custom_call.1} parent=1 // pred_region
      %s30 = ssub.s32 128, 128
      %31 = vsyncadd [#allocation6], %s30
      %s33 = sshll.u32 [#allocation5], 4
      %s34 = int_to_ptr.vmem [resolvable:$true] %s33
      %36 = dma.hbm_to_vmem [thread:$0]  %s1, 128, %s34, [#allocation6]
    $region9: #{tpu_custom_call.1} parent=1 // pred_fallthru
      _
    // Predicated region
    $region10: #{tpu_custom_call.1} parent=1 // pred_check
      _
    $region11: #{tpu_custom_call.1} parent=1 // pred_check_branch
      %38 = sbr.rel (0) target = $region13
    $region12: #{tpu_custom_call.1} parent=1 // pred_region
      %s40 = ssub.s32 128, 128
      %41 = vsyncadd [#allocation6], %s40
      %s43 = sshll.u32 [#allocation7], 4
      %s44 = int_to_ptr.vmem [resolvable:$true] %s43
      %46 = dma.hbm_to_vmem [thread:$0]  %s2, 128, %s44, [#allocation6]
    $region13: #{tpu_custom_call.1} parent=1 // pred_fallthru
      _
    // Predicated region
    $region14: #{tpu_custom_call.1} parent=1 // pred_check
      _
    $region15: #{tpu_custom_call.1} parent=1 // pred_check_branch
      %48 = sbr.rel (0) target = $region17
    $region16: #{tpu_custom_call.1} parent=1 // pred_region
      _
    $region17: #{tpu_custom_call.1} parent=1 // pred_fallthru
      _
    // Predicated region
    $region18: #{tpu_custom_call.1} parent=1 // pred_check
      _
    $region19: #{tpu_custom_call.1} parent=1 // pred_check_branch
      %50 = sbr.rel (0) target = $region21
    $region20: #{tpu_custom_call.1} parent=1 // pred_region
      %s52 = ssub.s32 4096, 4096
      %53 = vsyncadd [#allocation9], %s52
      %s54 = sshll.u32 [#allocation8], 4
      %s55 = int_to_ptr.vmem [resolvable:$true] %s54
      %60 = dma.hbm_to_vmem [thread:$0]  %s4, 4096, %s55, [#allocation9], 64, 64, 4
    $region21: #{tpu_custom_call.1} parent=1 // pred_fallthru
      _
    // Predicated region
    $region22: #{tpu_custom_call.1} parent=1 // pred_check
      _
    $region23: #{tpu_custom_call.1} parent=1 // pred_check_branch
      %62 = sbr.rel (0) target = $region25
    $region24: #{tpu_custom_call.1} parent=1 // pred_region
      _
    $region25: #{tpu_custom_call.1} parent=1 // pred_fallthru
      _
    // Predicated region
    $region26: #{tpu_custom_call.1} parent=1 // pred_check
      _
    $region27: #{tpu_custom_call.1} parent=1 // pred_check_branch
      %64 = sbr.rel (0) target = $region29
    $region28: #{tpu_custom_call.1} parent=1 // pred_region
      %65 = dma.done [#allocation3], 1024
    $region29: #{tpu_custom_call.1} parent=1 // pred_fallthru
      _
    // Predicated region
    $region30: #{tpu_custom_call.1} parent=1 // pred_check
      _
    $region31: #{tpu_custom_call.1} parent=1 // pred_check_branch
      %67 = sbr.rel (0) target = $region33
    $region32: #{tpu_custom_call.1} parent=1 // pred_region
      %68 = dma.done [#allocation6], 128
    $region33: #{tpu_custom_call.1} parent=1 // pred_fallthru
      _
    // Predicated region
    $region34: #{tpu_custom_call.1} parent=1 // pred_check
      _
    $region35: #{tpu_custom_call.1} parent=1 // pred_check_branch
      %70 = sbr.rel (0) target = $region37
    $region36: #{tpu_custom_call.1} parent=1 // pred_region
      %71 = dma.done [#allocation6], 128
    $region37: #{tpu_custom_call.1} parent=1 // pred_fallthru
      _
    // Predicated region
    $region38: #{tpu_custom_call.1} parent=1 // pred_check
      _
    $region39: #{tpu_custom_call.1} parent=1 // pred_check_branch
      %73 = sbr.rel (0) target = $region41
    $region40: #{tpu_custom_call.1} parent=1 // pred_region
      %74 = dma.done [#allocation9], 4096
    $region41: #{tpu_custom_call.1} parent=1 // pred_fallthru
      _
    %v76 = vld [vmem:[#allocation2] sm:$0xff]
    %v77 = vld [vmem:[#allocation2 + $0x8] sm:$0xff]
    %v78 = vld [vmem:[#allocation2 + $0x10] sm:$0xff]
    %v79 = vld [vmem:[#allocation2 + $0x18] sm:$0xff]
    %v80 = vld [vmem:[#allocation2 + $0x20] sm:$0xff]
    %v81 = vld [vmem:[#allocation2 + $0x28] sm:$0xff]
    %v82 = vld [vmem:[#allocation2 + $0x30] sm:$0xff]
    %v83 = vld [vmem:[#allocation2 + $0x38] sm:$0xff]
    %v92 = vcombine.high %v76, %v76
    %v93 = vcombine.high %v77, %v77
    %v94 = vcombine.high %v78, %v78
    %v95 = vcombine.high %v79, %v79
    %v96 = vcombine.high %v80, %v80
    %v97 = vcombine.high %v81, %v81
    %v98 = vcombine.high %v82, %v82
    %v99 = vcombine.high %v83, %v83
    %vm108 = vcmask 1043456
    %v109 = vsel %vm108, %v76, -inf
    %v110 = vsel %vm108, %v92, -inf
    %v111 = vmax.f32 %v109, %v110
    %112 = vmax.xlane.f32.xlu0 %v111
    %v113 = vpop.xlane.xlu0 %112
    %v114 = vsel %vm108, %v77, -inf
    %v115 = vsel %vm108, %v93, -inf
    %v116 = vmax.f32 %v114, %v115
    %117 = vmax.xlane.f32.xlu0 %v116
    %v118 = vpop.xlane.xlu0 %117
    %v119 = vsel %vm108, %v78, -inf
    %v120 = vsel %vm108, %v94, -inf
    %v121 = vmax.f32 %v119, %v120
    %122 = vmax.xlane.f32.xlu0 %v121
    %v123 = vpop.xlane.xlu0 %122
    %v124 = vsel %vm108, %v79, -inf
    %v125 = vsel %vm108, %v95, -inf
    %v126 = vmax.f32 %v124, %v125
    %127 = vmax.xlane.f32.xlu0 %v126
    %v128 = vpop.xlane.xlu0 %127
    %v129 = vsel %vm108, %v80, -inf
    %v130 = vsel %vm108, %v96, -inf
    %v131 = vmax.f32 %v129, %v130
    %132 = vmax.xlane.f32.xlu0 %v131
    %v133 = vpop.xlane.xlu0 %132
    %v134 = vsel %vm108, %v81, -inf
    %v135 = vsel %vm108, %v97, -inf
    %v136 = vmax.f32 %v134, %v135
    %137 = vmax.xlane.f32.xlu0 %v136
    %v138 = vpop.xlane.xlu0 %137
    %v139 = vsel %vm108, %v82, -inf
    %v140 = vsel %vm108, %v98, -inf
    %v141 = vmax.f32 %v139, %v140
    %142 = vmax.xlane.f32.xlu0 %v141
    %v143 = vpop.xlane.xlu0 %142
    %v144 = vsel %vm108, %v83, -inf
    %v145 = vsel %vm108, %v99, -inf
    %v146 = vmax.f32 %v144, %v145
    %147 = vmax.xlane.f32.xlu0 %v146
    %v148 = vpop.xlane.xlu0 %147
    %v149 = vsel %vm108, %v76, 0.0
    %v150 = vsel %vm108, %v92, 0.0
    %v151 = vadd.f32 %v149, %v150
    %152 = vadd.xlane.f32.xlu0 %v151
    %v153 = vpop.xlane.xlu0 %152
    %v154 = vsel %vm108, %v77, 0.0
    %v155 = vsel %vm108, %v93, 0.0
    %v156 = vadd.f32 %v154, %v155
    %157 = vadd.xlane.f32.xlu0 %v156
    %v158 = vpop.xlane.xlu0 %157
    %v159 = vsel %vm108, %v78, 0.0
    %v160 = vsel %vm108, %v94, 0.0
    %v161 = vadd.f32 %v159, %v160
    %162 = vadd.xlane.f32.xlu0 %v161
    %v163 = vpop.xlane.xlu0 %162
    %v164 = vsel %vm108, %v79, 0.0
    %v165 = vsel %vm108, %v95, 0.0
    %v166 = vadd.f32 %v164, %v165
    %167 = vadd.xlane.f32.xlu0 %v166
    %v168 = vpop.xlane.xlu0 %167
    %v169 = vsel %vm108, %v80, 0.0
    %v170 = vsel %vm108, %v96, 0.0
    %v171 = vadd.f32 %v169, %v170
    %172 = vadd.xlane.f32.xlu0 %v171
    %v173 = vpop.xlane.xlu0 %172
    %v174 = vsel %vm108, %v81, 0.0
    %v175 = vsel %vm108, %v97, 0.0
    %v176 = vadd.f32 %v174, %v175
    %177 = vadd.xlane.f32.xlu0 %v176
    %v178 = vpop.xlane.xlu0 %177
    %v179 = vsel %vm108, %v82, 0.0
    %v180 = vsel %vm108, %v98, 0.0
    %v181 = vadd.f32 %v179, %v180
    %182 = vadd.xlane.f32.xlu0 %v181
    %v183 = vpop.xlane.xlu0 %182
    %v184 = vsel %vm108, %v83, 0.0
    %v185 = vsel %vm108, %v99, 0.0
    %v186 = vadd.f32 %v184, %v185
    %187 = vadd.xlane.f32.xlu0 %v186
    %v188 = vpop.xlane.xlu0 %187
    %v189 = vrcp.pop 256.0
    %v190 = vmul.f32 %v153, %v189
    %v191 = vmul.f32 %v158, %v189
    %v192 = vmul.f32 %v163, %v189
    %v193 = vmul.f32 %v168, %v189
    %v194 = vmul.f32 %v173, %v189
    %v195 = vmul.f32 %v178, %v189
    %v196 = vmul.f32 %v183, %v189
    %v197 = vmul.f32 %v188, %v189
    %v198 = vmin.f32 %v113, 20.0
    %v199 = vmin.f32 %v118, 20.0
    %v200 = vmin.f32 %v123, 20.0
    %v201 = vmin.f32 %v128, 20.0
    %v202 = vmin.f32 %v133, 20.0
    %v203 = vmin.f32 %v138, 20.0
    %v204 = vmin.f32 %v143, 20.0
    %v205 = vmin.f32 %v148, 20.0
    %v206 = vmul.f32 %v198, 1.442695
    %v207 = vpow.pop %v206
    %v208 = vmul.f32 %v199, 1.442695
    %v209 = vpow.pop %v208
    %v210 = vmul.f32 %v200, 1.442695
    %v211 = vpow.pop %v210
    %v212 = vmul.f32 %v201, 1.442695
    %v213 = vpow.pop %v212
    %v214 = vmul.f32 %v202, 1.442695
    %v215 = vpow.pop %v214
    %v216 = vmul.f32 %v203, 1.442695
    %v217 = vpow.pop %v216
    %v218 = vmul.f32 %v204, 1.442695
    %v219 = vpow.pop %v218
    %v220 = vmul.f32 %v205, 1.442695
    %v221 = vpow.pop %v220
    %v222 = vadd.f32 %v207, 1.0
    %v223 = vadd.f32 %v209, 1.0
    %v224 = vadd.f32 %v211, 1.0
    %v225 = vadd.f32 %v213, 1.0
    %v226 = vadd.f32 %v215, 1.0
    %v227 = vadd.f32 %v217, 1.0
    %v228 = vadd.f32 %v219, 1.0
    %v229 = vadd.f32 %v221, 1.0
    %v230 = vmul.f32 %v222, %v222
    %v231 = vmul.f32 %v223, %v223
    %v232 = vmul.f32 %v224, %v224
    %v233 = vmul.f32 %v225, %v225
    %v234 = vmul.f32 %v226, %v226
    %v235 = vmul.f32 %v227, %v227
    %v236 = vmul.f32 %v228, %v228
    %v237 = vmul.f32 %v229, %v229
    %v238 = vsub.f32 %v230, 1.0
    %v239 = vsub.f32 %v231, 1.0
    %v240 = vsub.f32 %v232, 1.0
    %v241 = vsub.f32 %v233, 1.0
    %v242 = vsub.f32 %v234, 1.0
    %v243 = vsub.f32 %v235, 1.0
    %v244 = vsub.f32 %v236, 1.0
    %v245 = vsub.f32 %v237, 1.0
    %v246 = vmul.f32 %v113, %v238
    %v247 = vmul.f32 %v118, %v239
    %v248 = vmul.f32 %v123, %v240
    %v249 = vmul.f32 %v128, %v241
    %v250 = vmul.f32 %v133, %v242
    %v251 = vmul.f32 %v138, %v243
    %v252 = vmul.f32 %v143, %v244
    %v253 = vmul.f32 %v148, %v245
    %v254 = vadd.f32 %v230, 1.0
    %v255 = vadd.f32 %v231, 1.0
    %v256 = vadd.f32 %v232, 1.0
    %v257 = vadd.f32 %v233, 1.0
    %v258 = vadd.f32 %v234, 1.0
    %v259 = vadd.f32 %v235, 1.0
    %v260 = vadd.f32 %v236, 1.0
    %v261 = vadd.f32 %v237, 1.0
    %v262 = vrcp.pop %v254
    %v263 = vrcp.pop %v255
    %v264 = vrcp.pop %v256
    %v265 = vrcp.pop %v257
    %v266 = vrcp.pop %v258
    %v267 = vrcp.pop %v259
    %v268 = vrcp.pop %v260
    %v269 = vrcp.pop %v261
    %v270 = vmul.f32 %v246, %v262
    %v271 = vmul.f32 %v247, %v263
    %v272 = vmul.f32 %v248, %v264
    %v273 = vmul.f32 %v249, %v265
    %v274 = vmul.f32 %v250, %v266
    %v275 = vmul.f32 %v251, %v267
    %v276 = vmul.f32 %v252, %v268
    %v277 = vmul.f32 %v253, %v269
    %v278 = vpack.c.bf16 %v270, %v270
    %v279 = vpack.c.bf16 %v271, %v271
    %v280 = vpack.c.bf16 %v272, %v272
    %v281 = vpack.c.bf16 %v273, %v273
    %v282 = vpack.c.bf16 %v274, %v274
    %v283 = vpack.c.bf16 %v275, %v275
    %v284 = vpack.c.bf16 %v276, %v276
    %v285 = vpack.c.bf16 %v277, %v277
    %v286 = vmin.f32 %v190, 20.0
    %v287 = vmin.f32 %v191, 20.0
    %v288 = vmin.f32 %v192, 20.0
    %v289 = vmin.f32 %v193, 20.0
    %v290 = vmin.f32 %v194, 20.0
    %v291 = vmin.f32 %v195, 20.0
    %v292 = vmin.f32 %v196, 20.0
    %v293 = vmin.f32 %v197, 20.0
    %v294 = vmul.f32 %v286, 1.442695
    %v295 = vpow.pop %v294
    %v296 = vmul.f32 %v287, 1.442695
    %v297 = vpow.pop %v296
    %v298 = vmul.f32 %v288, 1.442695
    %v299 = vpow.pop %v298
    %v300 = vmul.f32 %v289, 1.442695
    %v301 = vpow.pop %v300
    %v302 = vmul.f32 %v290, 1.442695
    %v303 = vpow.pop %v302
    %v304 = vmul.f32 %v291, 1.442695
    %v305 = vpow.pop %v304
    %v306 = vmul.f32 %v292, 1.442695
    %v307 = vpow.pop %v306
    %v308 = vmul.f32 %v293, 1.442695
    %v309 = vpow.pop %v308
    %v310 = vadd.f32 %v295, 1.0
    %v311 = vadd.f32 %v297, 1.0
    %v312 = vadd.f32 %v299, 1.0
    %v313 = vadd.f32 %v301, 1.0
    %v314 = vadd.f32 %v303, 1.0
    %v315 = vadd.f32 %v305, 1.0
    %v316 = vadd.f32 %v307, 1.0
    %v317 = vadd.f32 %v309, 1.0
    %v318 = vmul.f32 %v310, %v310
    %v319 = vmul.f32 %v311, %v311
    %v320 = vmul.f32 %v312, %v312
    %v321 = vmul.f32 %v313, %v313
    %v322 = vmul.f32 %v314, %v314
    %v323 = vmul.f32 %v315, %v315
    %v324 = vmul.f32 %v316, %v316
    %v325 = vmul.f32 %v317, %v317
    %v326 = vsub.f32 %v318, 1.0
    %v327 = vsub.f32 %v319, 1.0
    %v328 = vsub.f32 %v320, 1.0
    %v329 = vsub.f32 %v321, 1.0
    %v330 = vsub.f32 %v322, 1.0
    %v331 = vsub.f32 %v323, 1.0
    %v332 = vsub.f32 %v324, 1.0
    %v333 = vsub.f32 %v325, 1.0
    %v334 = vmul.f32 %v190, %v326
    %v335 = vmul.f32 %v191, %v327
    %v336 = vmul.f32 %v192, %v328
    %v337 = vmul.f32 %v193, %v329
    %v338 = vmul.f32 %v194, %v330
    %v339 = vmul.f32 %v195, %v331
    %v340 = vmul.f32 %v196, %v332
    %v341 = vmul.f32 %v197, %v333
    %v342 = vadd.f32 %v318, 1.0
    %v343 = vadd.f32 %v319, 1.0
    %v344 = vadd.f32 %v320, 1.0
    %v345 = vadd.f32 %v321, 1.0
    %v346 = vadd.f32 %v322, 1.0
    %v347 = vadd.f32 %v323, 1.0
    %v348 = vadd.f32 %v324, 1.0
    %v349 = vadd.f32 %v325, 1.0
    %v350 = vrcp.pop %v342
    %v351 = vrcp.pop %v343
    %v352 = vrcp.pop %v344
    %v353 = vrcp.pop %v345
    %v354 = vrcp.pop %v346
    %v355 = vrcp.pop %v347
    %v356 = vrcp.pop %v348
    %v357 = vrcp.pop %v349
    %v358 = vmul.f32 %v334, %v350
    %v359 = vmul.f32 %v335, %v351
    %v360 = vmul.f32 %v336, %v352
    %v361 = vmul.f32 %v337, %v353
    %v362 = vmul.f32 %v338, %v354
    %v363 = vmul.f32 %v339, %v355
    %v364 = vmul.f32 %v340, %v356
    %v365 = vmul.f32 %v341, %v357
    %v366 = vpack.c.bf16 %v358, %v358
    %v367 = vpack.c.bf16 %v359, %v359
    %v368 = vpack.c.bf16 %v360, %v360
    %v369 = vpack.c.bf16 %v361, %v361
    %v370 = vpack.c.bf16 %v362, %v362
    %v371 = vpack.c.bf16 %v363, %v363
    %v372 = vpack.c.bf16 %v364, %v364
    %v373 = vpack.c.bf16 %v365, %v365
    %v374 = vld [vmem:[#allocation5] sm:$0xff]
    %v375 = vld [vmem:[#allocation7] sm:$0xff]
    %v384 = vunpack.c.l.b16 %v366
    %v385 = vunpack.c.l.b16 %v367
    %v386 = vunpack.c.l.b16 %v368
    %v387 = vunpack.c.l.b16 %v369
    %v388 = vunpack.c.l.b16 %v370
    %v389 = vunpack.c.l.b16 %v371
    %v390 = vunpack.c.l.b16 %v372
    %v391 = vunpack.c.l.b16 %v373
    %v392 = vlaneseq
    %v393 = vand.u32 %v392, 127
    %v394 = vlaneseq
    %v395 = vshrl.u32 %v394, 7
    %v396 = vsub.s32 %v393, %v395
    %v397 = vrot.slane %v384, %v396
    %v398 = vlaneseq
    %v399 = vshrl.u32 %v398, 7
    %v400 = vsub.s32 %v393, %v399
    %v401 = vrot.slane %v385, %v400
    %v402 = vlaneseq
    %v403 = vshrl.u32 %v402, 7
    %v404 = vsub.s32 %v393, %v403
    %v405 = vrot.slane %v386, %v404
    %v406 = vlaneseq
    %v407 = vshrl.u32 %v406, 7
    %v408 = vsub.s32 %v393, %v407
    %v409 = vrot.slane %v387, %v408
    %v410 = vlaneseq
    %v411 = vshrl.u32 %v410, 7
    %v412 = vsub.s32 %v393, %v411
    %v413 = vrot.slane %v388, %v412
    %v414 = vlaneseq
    %v415 = vshrl.u32 %v414, 7
    %v416 = vsub.s32 %v393, %v415
    %v417 = vrot.slane %v389, %v416
    %v418 = vlaneseq
    %v419 = vshrl.u32 %v418, 7
    %v420 = vsub.s32 %v393, %v419
    %v421 = vrot.slane %v390, %v420
    %v422 = vlaneseq
    %v423 = vshrl.u32 %v422, 7
    %v424 = vsub.s32 %v393, %v423
    %v425 = vrot.slane %v391, %v424
    %vm426 = vcmask 1041409
    %v427 = vsel %vm426, %v401, %v397
    %vm428 = vcmask 1042434
    %v429 = vsel %vm428, %v405, %v427
    %vm430 = vcmask 1043459
    %v431 = vsel %vm430, %v409, %v429
    %vm432 = vcmask 1044484
    %v433 = vsel %vm432, %v413, %v431
    %vm434 = vcmask 1045509
    %v435 = vsel %vm434, %v417, %v433
    %vm436 = vcmask 1046534
    %v437 = vsel %vm436, %v421, %v435
    %vm438 = vcmask 1047559
    %v439 = vsel %vm438, %v425, %v437
    %v440 = vpack.c.b16 %v439, %v439
    %v442 = vcombine.high %v375, %v375
    %v444 = vunpack.c.l.s4 1983009808
    %v445 = vunpack.c.0.s8 %v444
    %v446 = vlaneseq
    %v447 = vshrl.u32 %v446, 7
    %v448 = vsub.s32 %v445, %v447
    %v449 = vrot.slane %v375, %v448
    %v451 = vunpack.c.l.s4 1983009808
    %v452 = vunpack.c.0.s8 %v451
    %v453 = vlaneseq
    %v454 = vshrl.u32 %v453, 7
    %v455 = vsub.s32 %v452, %v454
    %v456 = vrot.slane %v442, %v455
    %v457 = vcombine.high %v449, %v449
    %v458 = vcombine.high %v456, %v456
    %vm459 = vcmask 31744
    %v461 = vsel %vm459, %v440, 0
    %vm463 = vcmask 1041408
    %v465 = vsel %vm463, %v449, 0
    %v468 = vsel %vm463, %v457, 0
    %v471 = vsel %vm463, %v456, 0
    %v474 = vsel %vm463, %v458, 0
    %476 = vmatprep.subr.bf16.mxu0 0
    %477 = vmatpush1.bf16.msra.mxu0 0
    %478 = vmatprep.subr.bf16.mxu0 0
    %479 = vmatpush1.bf16.msra.mxu0 0
    %480 = vmatprep.subr.bf16.mxu0 0
    %481 = vmatpush1.bf16.msra.mxu0 0
    %482 = vmatprep.subr.bf16.mxu0 0
    %483 = vmatpush1.bf16.msra.mxu0 0
    %484 = vmatprep.subr.bf16.mxu0 0
    %485 = vmatpush1.bf16.msra.mxu0 0
    %486 = vmatprep.subr.bf16.mxu0 0
    %487 = vmatpush1.bf16.msra.mxu0 0
    %488 = vmatprep.subr.bf16.mxu0 0
    %489 = vmatpush1.bf16.msra.mxu0 0
    %490 = vmatprep.subr.bf16.mxu0 %v468
    %491 = vmatpush1.bf16.msra.mxu0 %v465
    %492 = vmatprep.subr.bf16.mxu0 0
    %493 = vmatpush2.bf16.msra.mxu0 0
    %494 = vmatprep.subr.bf16.mxu0 0
    %495 = vmatpush2.bf16.msra.mxu0 0
    %496 = vmatprep.subr.bf16.mxu0 0
    %497 = vmatpush2.bf16.msra.mxu0 0
    %498 = vmatprep.subr.bf16.mxu0 0
    %499 = vmatpush2.bf16.msra.mxu0 0
    %500 = vmatprep.subr.bf16.mxu0 0
    %501 = vmatpush2.bf16.msra.mxu0 0
    %502 = vmatprep.subr.bf16.mxu0 0
    %503 = vmatpush2.bf16.msra.mxu0 0
    %504 = vmatprep.subr.bf16.mxu0 0
    %505 = vmatpush2.bf16.msra.mxu0 0
    %506 = vmatprep.subr.bf16.mxu0 0
    %507 = vmatpush2.bf16.msra.mxu0 0
    %508 = vmatprep.mubr.bf16.mxu0 0
    %509 = vmatmul.mubr.bf16.gmra.mxu0 %v461
    %v510 = vpop.f32.mrf.mxu0
    %v511 = vadd.f32 0.0, %v510
    %v512 = vpop.f32.mrf.mxu0
    %v513 = vadd.f32 0.0, %v512
    %v514 = vpop.f32.mrf.mxu0
    %v515 = vpop.f32.mrf.mxu0
    %516 = vdwg.mxu0
    %517 = vmatprep.subr.bf16.mxu0 0
    %518 = vmatpush1.bf16.msra.mxu0 0
    %519 = vmatprep.subr.bf16.mxu0 0
    %520 = vmatpush1.bf16.msra.mxu0 0
    %521 = vmatprep.subr.bf16.mxu0 0
    %522 = vmatpush1.bf16.msra.mxu0 0
    %523 = vmatprep.subr.bf16.mxu0 0
    %524 = vmatpush1.bf16.msra.mxu0 0
    %525 = vmatprep.subr.bf16.mxu0 0
    %526 = vmatpush1.bf16.msra.mxu0 0
    %527 = vmatprep.subr.bf16.mxu0 0
    %528 = vmatpush1.bf16.msra.mxu0 0
    %529 = vmatprep.subr.bf16.mxu0 0
    %530 = vmatpush1.bf16.msra.mxu0 0
    %531 = vmatprep.subr.bf16.mxu0 %v474
    %532 = vmatpush1.bf16.msra.mxu0 %v471
    %533 = vmatprep.subr.bf16.mxu0 0
    %534 = vmatpush2.bf16.msra.mxu0 0
    %535 = vmatprep.subr.bf16.mxu0 0
    %536 = vmatpush2.bf16.msra.mxu0 0
    %537 = vmatprep.subr.bf16.mxu0 0
    %538 = vmatpush2.bf16.msra.mxu0 0
    %539 = vmatprep.subr.bf16.mxu0 0
    %540 = vmatpush2.bf16.msra.mxu0 0
    %541 = vmatprep.subr.bf16.mxu0 0
    %542 = vmatpush2.bf16.msra.mxu0 0
    %543 = vmatprep.subr.bf16.mxu0 0
    %544 = vmatpush2.bf16.msra.mxu0 0
    %545 = vmatprep.subr.bf16.mxu0 0
    %546 = vmatpush2.bf16.msra.mxu0 0
    %547 = vmatprep.subr.bf16.mxu0 0
    %548 = vmatpush2.bf16.msra.mxu0 0
    %549 = vmatprep.mubr.bf16.mxu0 0
    %550 = vmatmul.mubr.bf16.gmra.mxu0 %v461
    %v551 = vpop.f32.mrf.mxu0
    %v552 = vadd.f32 0.0, %v551
    %v553 = vpop.f32.mrf.mxu0
    %v554 = vadd.f32 0.0, %v553
    %v555 = vpop.f32.mrf.mxu0
    %v556 = vpop.f32.mrf.mxu0
    %557 = vdwg.mxu0
    %v566 = vunpack.c.l.b16 %v278
    %v567 = vunpack.c.l.b16 %v279
    %v568 = vunpack.c.l.b16 %v280
    %v569 = vunpack.c.l.b16 %v281
    %v570 = vunpack.c.l.b16 %v282
    %v571 = vunpack.c.l.b16 %v283
    %v572 = vunpack.c.l.b16 %v284
    %v573 = vunpack.c.l.b16 %v285
    %v574 = vlaneseq
    %v575 = vshrl.u32 %v574, 7
    %v576 = vsub.s32 %v393, %v575
    %v577 = vrot.slane %v566, %v576
    %v578 = vlaneseq
    %v579 = vshrl.u32 %v578, 7
    %v580 = vsub.s32 %v393, %v579
    %v581 = vrot.slane %v567, %v580
    %v582 = vlaneseq
    %v583 = vshrl.u32 %v582, 7
    %v584 = vsub.s32 %v393, %v583
    %v585 = vrot.slane %v568, %v584
    %v586 = vlaneseq
    %v587 = vshrl.u32 %v586, 7
    %v588 = vsub.s32 %v393, %v587
    %v589 = vrot.slane %v569, %v588
    %v590 = vlaneseq
    %v591 = vshrl.u32 %v590, 7
    %v592 = vsub.s32 %v393, %v591
    %v593 = vrot.slane %v570, %v592
    %v594 = vlaneseq
    %v595 = vshrl.u32 %v594, 7
    %v596 = vsub.s32 %v393, %v595
    %v597 = vrot.slane %v571, %v596
    %v598 = vlaneseq
    %v599 = vshrl.u32 %v598, 7
    %v600 = vsub.s32 %v393, %v599
    %v601 = vrot.slane %v572, %v600
    %v602 = vlaneseq
    %v603 = vshrl.u32 %v602, 7
    %v604 = vsub.s32 %v393, %v603
    %v605 = vrot.slane %v573, %v604
    %v606 = vsel %vm426, %v581, %v577
    %v607 = vsel %vm428, %v585, %v606
    %v608 = vsel %vm430, %v589, %v607
    %v609 = vsel %vm432, %v593, %v608
    %v610 = vsel %vm434, %v597, %v609
    %v611 = vsel %vm436, %v601, %v610
    %v612 = vsel %vm438, %v605, %v611
    %v613 = vpack.c.b16 %v612, %v612
    %v615 = vcombine.high %v374, %v374
    %v617 = vunpack.c.l.s4 1983009808
    %v618 = vunpack.c.0.s8 %v617
    %v619 = vlaneseq
    %v620 = vshrl.u32 %v619, 7
    %v621 = vsub.s32 %v618, %v620
    %v622 = vrot.slane %v374, %v621
    %v624 = vunpack.c.l.s4 1983009808
    %v625 = vunpack.c.0.s8 %v624
    %v626 = vlaneseq
    %v627 = vshrl.u32 %v626, 7
    %v628 = vsub.s32 %v625, %v627
    %v629 = vrot.slane %v615, %v628
    %v630 = vcombine.high %v622, %v622
    %v631 = vcombine.high %v629, %v629
    %v633 = vsel %vm459, %v613, 0
    %v636 = vsel %vm463, %v622, 0
    %v639 = vsel %vm463, %v630, 0
    %v642 = vsel %vm463, %v629, 0
    %v645 = vsel %vm463, %v631, 0
    %647 = vmatprep.subr.bf16.mxu0 0
    %648 = vmatpush1.bf16.msra.mxu0 0
    %649 = vmatprep.subr.bf16.mxu0 0
    %650 = vmatpush1.bf16.msra.mxu0 0
    %651 = vmatprep.subr.bf16.mxu0 0
    %652 = vmatpush1.bf16.msra.mxu0 0
    %653 = vmatprep.subr.bf16.mxu0 0
    %654 = vmatpush1.bf16.msra.mxu0 0
    %655 = vmatprep.subr.bf16.mxu0 0
    %656 = vmatpush1.bf16.msra.mxu0 0
    %657 = vmatprep.subr.bf16.mxu0 0
    %658 = vmatpush1.bf16.msra.mxu0 0
    %659 = vmatprep.subr.bf16.mxu0 0
    %660 = vmatpush1.bf16.msra.mxu0 0
    %661 = vmatprep.subr.bf16.mxu0 %v639
    %662 = vmatpush1.bf16.msra.mxu0 %v636
    %663 = vmatprep.subr.bf16.mxu0 0
    %664 = vmatpush2.bf16.msra.mxu0 0
    %665 = vmatprep.subr.bf16.mxu0 0
    %666 = vmatpush2.bf16.msra.mxu0 0
    %667 = vmatprep.subr.bf16.mxu0 0
    %668 = vmatpush2.bf16.msra.mxu0 0
    %669 = vmatprep.subr.bf16.mxu0 0
    %670 = vmatpush2.bf16.msra.mxu0 0
    %671 = vmatprep.subr.bf16.mxu0 0
    %672 = vmatpush2.bf16.msra.mxu0 0
    %673 = vmatprep.subr.bf16.mxu0 0
    %674 = vmatpush2.bf16.msra.mxu0 0
    %675 = vmatprep.subr.bf16.mxu0 0
    %676 = vmatpush2.bf16.msra.mxu0 0
    %677 = vmatprep.subr.bf16.mxu0 0
    %678 = vmatpush2.bf16.msra.mxu0 0
    %679 = vmatprep.mubr.bf16.mxu0 0
    %680 = vmatmul.mubr.bf16.gmra.mxu0 %v633
    %v681 = vpop.f32.mrf.mxu0
    %v682 = vadd.f32 %v511, %v681
    %v683 = vpop.f32.mrf.mxu0
    %v684 = vadd.f32 %v513, %v683
    %v685 = vpop.f32.mrf.mxu0
    %v686 = vpop.f32.mrf.mxu0
    %687 = vdwg.mxu0
    %688 = vmatprep.subr.bf16.mxu0 0
    %689 = vmatpush1.bf16.msra.mxu0 0
    %690 = vmatprep.subr.bf16.mxu0 0
    %691 = vmatpush1.bf16.msra.mxu0 0
    %692 = vmatprep.subr.bf16.mxu0 0
    %693 = vmatpush1.bf16.msra.mxu0 0
    %694 = vmatprep.subr.bf16.mxu0 0
    %695 = vmatpush1.bf16.msra.mxu0 0
    %696 = vmatprep.subr.bf16.mxu0 0
    %697 = vmatpush1.bf16.msra.mxu0 0
    %698 = vmatprep.subr.bf16.mxu0 0
    %699 = vmatpush1.bf16.msra.mxu0 0
    %700 = vmatprep.subr.bf16.mxu0 0
    %701 = vmatpush1.bf16.msra.mxu0 0
    %702 = vmatprep.subr.bf16.mxu0 %v645
    %703 = vmatpush1.bf16.msra.mxu0 %v642
    %704 = vmatprep.subr.bf16.mxu0 0
    %705 = vmatpush2.bf16.msra.mxu0 0
    %706 = vmatprep.subr.bf16.mxu0 0
    %707 = vmatpush2.bf16.msra.mxu0 0
    %708 = vmatprep.subr.bf16.mxu0 0
    %709 = vmatpush2.bf16.msra.mxu0 0
    %710 = vmatprep.subr.bf16.mxu0 0
    %711 = vmatpush2.bf16.msra.mxu0 0
    %712 = vmatprep.subr.bf16.mxu0 0
    %713 = vmatpush2.bf16.msra.mxu0 0
    %714 = vmatprep.subr.bf16.mxu0 0
    %715 = vmatpush2.bf16.msra.mxu0 0
    %716 = vmatprep.subr.bf16.mxu0 0
    %717 = vmatpush2.bf16.msra.mxu0 0
    %718 = vmatprep.subr.bf16.mxu0 0
    %719 = vmatpush2.bf16.msra.mxu0 0
    %720 = vmatprep.mubr.bf16.mxu0 0
    %721 = vmatmul.mubr.bf16.gmra.mxu0 %v633
    %v722 = vpop.f32.mrf.mxu0
    %v723 = vadd.f32 %v552, %v722
    %v724 = vpop.f32.mrf.mxu0
    %v725 = vadd.f32 %v554, %v724
    %v726 = vpop.f32.mrf.mxu0
    %v727 = vpop.f32.mrf.mxu0
    %728 = vdwg.mxu0
    %v729 = vld [vmem:[%s3] sm:$0xf]
    %v731 = vlaneseq
    %v732 = vshrl.u32 %v731, 7
    %v733 = vsub.s32 0, %v732
    %v734 = vrot.slane %v729, %v733
    %v735 = vlaneseq
    %v736 = vshrl.u32 %v735, 7
    %v737 = vsub.s32 1, %v736
    %v738 = vrot.slane %v729, %v737
    %v739 = vlaneseq
    %v740 = vshrl.u32 %v739, 7
    %v741 = vsub.s32 2, %v740
    %v742 = vrot.slane %v729, %v741
    %v743 = vlaneseq
    %v744 = vshrl.u32 %v743, 7
    %v745 = vsub.s32 3, %v744
    %v746 = vrot.slane %v729, %v745
    %v751 = vadd.f32 %v682, %v734
    %v752 = vadd.f32 %v684, %v738
    %v753 = vadd.f32 %v723, %v742
    %v754 = vadd.f32 %v725, %v746
    %v755 = vmin.f32 %v751, 20.0
    %v756 = vmin.f32 %v752, 20.0
    %v757 = vmin.f32 %v753, 20.0
    %v758 = vmin.f32 %v754, 20.0
    %v759 = vmul.f32 %v755, 1.442695
    %v760 = vpow.pop %v759
    %v761 = vmul.f32 %v756, 1.442695
    %v762 = vpow.pop %v761
    %v763 = vmul.f32 %v757, 1.442695
    %v764 = vpow.pop %v763
    %v765 = vmul.f32 %v758, 1.442695
    %v766 = vpow.pop %v765
    %v767 = vadd.f32 %v760, 1.0
    %v768 = vadd.f32 %v762, 1.0
    %v769 = vadd.f32 %v764, 1.0
    %v770 = vadd.f32 %v766, 1.0
    %v771 = vmul.f32 %v767, %v767
    %v772 = vmul.f32 %v768, %v768
    %v773 = vmul.f32 %v769, %v769
    %v774 = vmul.f32 %v770, %v770
    %v775 = vsub.f32 %v771, 1.0
    %v776 = vsub.f32 %v772, 1.0
    %v777 = vsub.f32 %v773, 1.0
    %v778 = vsub.f32 %v774, 1.0
    %v779 = vmul.f32 %v751, %v775
    %v780 = vmul.f32 %v752, %v776
    %v781 = vmul.f32 %v753, %v777
    %v782 = vmul.f32 %v754, %v778
    %v783 = vadd.f32 %v771, 1.0
    %v784 = vadd.f32 %v772, 1.0
    %v785 = vadd.f32 %v773, 1.0
    %v786 = vadd.f32 %v774, 1.0
    %v787 = vrcp.pop %v783
    %v788 = vrcp.pop %v784
    %v789 = vrcp.pop %v785
    %v790 = vrcp.pop %v786
    %v791 = vmul.f32 %v779, %v787
    %v792 = vmul.f32 %v780, %v788
    %v793 = vmul.f32 %v781, %v789
    %v794 = vmul.f32 %v782, %v790
    %v795 = vpack.c.bf16 %v791, %v791
    %v796 = vpack.c.bf16 %v792, %v792
    %v797 = vpack.c.bf16 %v793, %v793
    %v798 = vpack.c.bf16 %v794, %v794
    %v799 = vld [vmem:[#allocation8] sm:$0xf]
    %v800 = vld [vmem:[#allocation8 + $0x4] sm:$0xf]
    %v801 = vld [vmem:[#allocation8 + $0x8] sm:$0xf]
    %v802 = vld [vmem:[#allocation8 + $0xc] sm:$0xf]
    %v803 = vld [vmem:[#allocation8 + $0x10] sm:$0xf]
    %v804 = vld [vmem:[#allocation8 + $0x14] sm:$0xf]
    %v805 = vld [vmem:[#allocation8 + $0x18] sm:$0xf]
    %v806 = vld [vmem:[#allocation8 + $0x1c] sm:$0xf]
    %v807 = vld [vmem:[#allocation8 + $0x20] sm:$0xf]
    %v808 = vld [vmem:[#allocation8 + $0x24] sm:$0xf]
    %v809 = vld [vmem:[#allocation8 + $0x28] sm:$0xf]
    %v810 = vld [vmem:[#allocation8 + $0x2c] sm:$0xf]
    %v811 = vld [vmem:[#allocation8 + $0x30] sm:$0xf]
    %v812 = vld [vmem:[#allocation8 + $0x34] sm:$0xf]
    %v813 = vld [vmem:[#allocation8 + $0x38] sm:$0xf]
    %v814 = vld [vmem:[#allocation8 + $0x3c] sm:$0xf]
    %v815 = vld [vmem:[#allocation8 + $0x40] sm:$0xf]
    %v816 = vld [vmem:[#allocation8 + $0x44] sm:$0xf]
    %v817 = vld [vmem:[#allocation8 + $0x48] sm:$0xf]
    %v818 = vld [vmem:[#allocation8 + $0x4c] sm:$0xf]
    %v819 = vld [vmem:[#allocation8 + $0x50] sm:$0xf]
    %v820 = vld [vmem:[#allocation8 + $0x54] sm:$0xf]
    %v821 = vld [vmem:[#allocation8 + $0x58] sm:$0xf]
    %v822 = vld [vmem:[#allocation8 + $0x5c] sm:$0xf]
    %v823 = vld [vmem:[#allocation8 + $0x60] sm:$0xf]
    %v824 = vld [vmem:[#allocation8 + $0x64] sm:$0xf]
    %v825 = vld [vmem:[#allocation8 + $0x68] sm:$0xf]
    %v826 = vld [vmem:[#allocation8 + $0x6c] sm:$0xf]
    %v827 = vld [vmem:[#allocation8 + $0x70] sm:$0xf]
    %v828 = vld [vmem:[#allocation8 + $0x74] sm:$0xf]
    %v829 = vld [vmem:[#allocation8 + $0x78] sm:$0xf]
    %v830 = vld [vmem:[#allocation8 + $0x7c] sm:$0xf]
    %v831 = vld [vmem:[#allocation8 + $0x80] sm:$0xf]
    %v832 = vld [vmem:[#allocation8 + $0x84] sm:$0xf]
    %v833 = vld [vmem:[#allocation8 + $0x88] sm:$0xf]
    %v834 = vld [vmem:[#allocation8 + $0x8c] sm:$0xf]
    %v835 = vld [vmem:[#allocation8 + $0x90] sm:$0xf]
    %v836 = vld [vmem:[#allocation8 + $0x94] sm:$0xf]
    %v837 = vld [vmem:[#allocation8 + $0x98] sm:$0xf]
    %v838 = vld [vmem:[#allocation8 + $0x9c] sm:$0xf]
    %v839 = vld [vmem:[#allocation8 + $0xa0] sm:$0xf]
    %v840 = vld [vmem:[#allocation8 + $0xa4] sm:$0xf]
    %v841 = vld [vmem:[#allocation8 + $0xa8] sm:$0xf]
    %v842 = vld [vmem:[#allocation8 + $0xac] sm:$0xf]
    %v843 = vld [vmem:[#allocation8 + $0xb0] sm:$0xf]
    %v844 = vld [vmem:[#allocation8 + $0xb4] sm:$0xf]
    %v845 = vld [vmem:[#allocation8 + $0xb8] sm:$0xf]
    %v846 = vld [vmem:[#allocation8 + $0xbc] sm:$0xf]
    %v847 = vld [vmem:[#allocation8 + $0xc0] sm:$0xf]
    %v848 = vld [vmem:[#allocation8 + $0xc4] sm:$0xf]
    %v849 = vld [vmem:[#allocation8 + $0xc8] sm:$0xf]
    %v850 = vld [vmem:[#allocation8 + $0xcc] sm:$0xf]
    %v851 = vld [vmem:[#allocation8 + $0xd0] sm:$0xf]
    %v852 = vld [vmem:[#allocation8 + $0xd4] sm:$0xf]
    %v853 = vld [vmem:[#allocation8 + $0xd8] sm:$0xf]
    %v854 = vld [vmem:[#allocation8 + $0xdc] sm:$0xf]
    %v855 = vld [vmem:[#allocation8 + $0xe0] sm:$0xf]
    %v856 = vld [vmem:[#allocation8 + $0xe4] sm:$0xf]
    %v857 = vld [vmem:[#allocation8 + $0xe8] sm:$0xf]
    %v858 = vld [vmem:[#allocation8 + $0xec] sm:$0xf]
    %v859 = vld [vmem:[#allocation8 + $0xf0] sm:$0xf]
    %v860 = vld [vmem:[#allocation8 + $0xf4] sm:$0xf]
    %v861 = vld [vmem:[#allocation8 + $0xf8] sm:$0xf]
    %v862 = vld [vmem:[#allocation8 + $0xfc] sm:$0xf]
    %v863 = vld [vmem:[%s5] sm:$0x1]
    %v865 = vlaneseq
    %v866 = vshrl.u32 %v865, 7
    %v867 = vsub.s32 0, %v866
    %v868 = vrot.slane %v863, %v867
    %v934 = vunpack.c.l.b16 %v799
    %v935 = vunpack.c.l.b16 %v800
    %v936 = vunpack.c.l.b16 %v801
    %v937 = vunpack.c.l.b16 %v802
    %v938 = vunpack.c.l.b16 %v803
    %v939 = vunpack.c.l.b16 %v804
    %v940 = vunpack.c.l.b16 %v805
    %v941 = vunpack.c.l.b16 %v806
    %v942 = vunpack.c.l.b16 %v807
    %v943 = vunpack.c.l.b16 %v808
    %v944 = vunpack.c.l.b16 %v809
    %v945 = vunpack.c.l.b16 %v810
    %v946 = vunpack.c.l.b16 %v811
    %v947 = vunpack.c.l.b16 %v812
    %v948 = vunpack.c.l.b16 %v813
    %v949 = vunpack.c.l.b16 %v814
    %v950 = vunpack.c.l.b16 %v815
    %v951 = vunpack.c.l.b16 %v816
    %v952 = vunpack.c.l.b16 %v817
    %v953 = vunpack.c.l.b16 %v818
    %v954 = vunpack.c.l.b16 %v819
    %v955 = vunpack.c.l.b16 %v820
    %v956 = vunpack.c.l.b16 %v821
    %v957 = vunpack.c.l.b16 %v822
    %v958 = vunpack.c.l.b16 %v823
    %v959 = vunpack.c.l.b16 %v824
    %v960 = vunpack.c.l.b16 %v825
    %v961 = vunpack.c.l.b16 %v826
    %v962 = vunpack.c.l.b16 %v827
    %v963 = vunpack.c.l.b16 %v828
    %v964 = vunpack.c.l.b16 %v829
    %v965 = vunpack.c.l.b16 %v830
    %v966 = vunpack.c.l.b16 %v831
    %v967 = vunpack.c.l.b16 %v832
    %v968 = vunpack.c.l.b16 %v833
    %v969 = vunpack.c.l.b16 %v834
    %v970 = vunpack.c.l.b16 %v835
    %v971 = vunpack.c.l.b16 %v836
    %v972 = vunpack.c.l.b16 %v837
    %v973 = vunpack.c.l.b16 %v838
    %v974 = vunpack.c.l.b16 %v839
    %v975 = vunpack.c.l.b16 %v840
    %v976 = vunpack.c.l.b16 %v841
    %v977 = vunpack.c.l.b16 %v842
    %v978 = vunpack.c.l.b16 %v843
    %v979 = vunpack.c.l.b16 %v844
    %v980 = vunpack.c.l.b16 %v845
    %v981 = vunpack.c.l.b16 %v846
    %v982 = vunpack.c.l.b16 %v847
    %v983 = vunpack.c.l.b16 %v848
    %v984 = vunpack.c.l.b16 %v849
    %v985 = vunpack.c.l.b16 %v850
    %v986 = vunpack.c.l.b16 %v851
    %v987 = vunpack.c.l.b16 %v852
    %v988 = vunpack.c.l.b16 %v853
    %v989 = vunpack.c.l.b16 %v854
    %v990 = vunpack.c.l.b16 %v855
    %v991 = vunpack.c.l.b16 %v856
    %v992 = vunpack.c.l.b16 %v857
    %v993 = vunpack.c.l.b16 %v858
    %v994 = vunpack.c.l.b16 %v859
    %v995 = vunpack.c.l.b16 %v860
    %v996 = vunpack.c.l.b16 %v861
    %v997 = vunpack.c.l.b16 %v862
    %v998 = vpack.c.b16 %v935, %v934
    %v999 = vpack.c.b16 %v937, %v936
    %v1000 = vpack.c.b16 %v939, %v938
    %v1001 = vpack.c.b16 %v941, %v940
    %v1002 = vpack.c.b16 %v943, %v942
    %v1003 = vpack.c.b16 %v945, %v944
    %v1004 = vpack.c.b16 %v947, %v946
    %v1005 = vpack.c.b16 %v949, %v948
    %v1006 = vpack.c.b16 %v951, %v950
    %v1007 = vpack.c.b16 %v953, %v952
    %v1008 = vpack.c.b16 %v955, %v954
    %v1009 = vpack.c.b16 %v957, %v956
    %v1010 = vpack.c.b16 %v959, %v958
    %v1011 = vpack.c.b16 %v961, %v960
    %v1012 = vpack.c.b16 %v963, %v962
    %v1013 = vpack.c.b16 %v965, %v964
    %v1014 = vpack.c.b16 %v967, %v966
    %v1015 = vpack.c.b16 %v969, %v968
    %v1016 = vpack.c.b16 %v971, %v970
    %v1017 = vpack.c.b16 %v973, %v972
    %v1018 = vpack.c.b16 %v975, %v974
    %v1019 = vpack.c.b16 %v977, %v976
    %v1020 = vpack.c.b16 %v979, %v978
    %v1021 = vpack.c.b16 %v981, %v980
    %v1022 = vpack.c.b16 %v983, %v982
    %v1023 = vpack.c.b16 %v985, %v984
    %v1024 = vpack.c.b16 %v987, %v986
    %v1025 = vpack.c.b16 %v989, %v988
    %v1026 = vpack.c.b16 %v991, %v990
    %v1027 = vpack.c.b16 %v993, %v992
    %v1028 = vpack.c.b16 %v995, %v994
    %v1029 = vpack.c.b16 %v997, %v996
    %1062 = vmatprep.subr.bf16.mxu0 0
    %1063 = vmatpush1.bf16.msra.mxu0 %v1005
    %1064 = vmatprep.subr.bf16.mxu0 0
    %1065 = vmatpush1.bf16.msra.mxu0 %v1004
    %1066 = vmatprep.subr.bf16.mxu0 0
    %1067 = vmatpush1.bf16.msra.mxu0 %v1003
    %1068 = vmatprep.subr.bf16.mxu0 0
    %1069 = vmatpush1.bf16.msra.mxu0 %v1002
    %1070 = vmatprep.subr.bf16.mxu0 0
    %1071 = vmatpush1.bf16.msra.mxu0 %v1001
    %1072 = vmatprep.subr.bf16.mxu0 0
    %1073 = vmatpush1.bf16.msra.mxu0 %v1000
    %1074 = vmatprep.subr.bf16.mxu0 0
    %1075 = vmatpush1.bf16.msra.mxu0 %v999
    %1076 = vmatprep.subr.bf16.mxu0 0
    %1077 = vmatpush1.bf16.msra.mxu0 %v998
    %1078 = vmatprep.subr.bf16.mxu0 0
    %1079 = vmatpush2.bf16.msra.mxu0 %v1013
    %1080 = vmatprep.subr.bf16.mxu0 0
    %1081 = vmatpush2.bf16.msra.mxu0 %v1012
    %1082 = vmatprep.subr.bf16.mxu0 0
    %1083 = vmatpush2.bf16.msra.mxu0 %v1011
    %1084 = vmatprep.subr.bf16.mxu0 0
    %1085 = vmatpush2.bf16.msra.mxu0 %v1010
    %1086 = vmatprep.subr.bf16.mxu0 0
    %1087 = vmatpush2.bf16.msra.mxu0 %v1009
    %1088 = vmatprep.subr.bf16.mxu0 0
    %1089 = vmatpush2.bf16.msra.mxu0 %v1008
    %1090 = vmatprep.subr.bf16.mxu0 0
    %1091 = vmatpush2.bf16.msra.mxu0 %v1007
    %1092 = vmatprep.subr.bf16.mxu0 0
    %1093 = vmatpush2.bf16.msra.mxu0 %v1006
    %1094 = vmatprep.mubr.bf16.mxu0 %v796
    %1095 = vmatmul.mubr.bf16.gmra.mxu0 %v795
    %v1096 = vpop.f32.mrf.mxu0
    %v1097 = vadd.f32 %v868, %v1096
    %v1098 = vpop.f32.mrf.mxu0
    %v1099 = vpop.f32.mrf.mxu0
    %v1100 = vpop.f32.mrf.mxu0
    %1101 = vdwg.mxu0
    %1102 = vmatprep.subr.bf16.mxu0 0
    %1103 = vmatpush1.bf16.msra.mxu0 %v1021
    %1104 = vmatprep.subr.bf16.mxu0 0
    %1105 = vmatpush1.bf16.msra.mxu0 %v1020
    %1106 = vmatprep.subr.bf16.mxu0 0
    %1107 = vmatpush1.bf16.msra.mxu0 %v1019
    %1108 = vmatprep.subr.bf16.mxu0 0
    %1109 = vmatpush1.bf16.msra.mxu0 %v1018
    %1110 = vmatprep.subr.bf16.mxu0 0
    %1111 = vmatpush1.bf16.msra.mxu0 %v1017
    %1112 = vmatprep.subr.bf16.mxu0 0
    %1113 = vmatpush1.bf16.msra.mxu0 %v1016
    %1114 = vmatprep.subr.bf16.mxu0 0
    %1115 = vmatpush1.bf16.msra.mxu0 %v1015
    %1116 = vmatprep.subr.bf16.mxu0 0
    %1117 = vmatpush1.bf16.msra.mxu0 %v1014
    %1118 = vmatprep.subr.bf16.mxu0 0
    %1119 = vmatpush2.bf16.msra.mxu0 %v1029
    %1120 = vmatprep.subr.bf16.mxu0 0
    %1121 = vmatpush2.bf16.msra.mxu0 %v1028
    %1122 = vmatprep.subr.bf16.mxu0 0
    %1123 = vmatpush2.bf16.msra.mxu0 %v1027
    %1124 = vmatprep.subr.bf16.mxu0 0
    %1125 = vmatpush2.bf16.msra.mxu0 %v1026
    %1126 = vmatprep.subr.bf16.mxu0 0
    %1127 = vmatpush2.bf16.msra.mxu0 %v1025
    %1128 = vmatprep.subr.bf16.mxu0 0
    %1129 = vmatpush2.bf16.msra.mxu0 %v1024
    %1130 = vmatprep.subr.bf16.mxu0 0
    %1131 = vmatpush2.bf16.msra.mxu0 %v1023
    %1132 = vmatprep.subr.bf16.mxu0 0
    %1133 = vmatpush2.bf16.msra.mxu0 %v1022
    %1134 = vmatprep.mubr.bf16.mxu0 %v798
    %1135 = vmatmul.mubr.bf16.gmra.mxu0 %v797
    %v1136 = vpop.f32.mrf.mxu0
    %v1137 = vadd.f32 %v1097, %v1136
    %v1138 = vpop.f32.mrf.mxu0
    %v1139 = vpop.f32.mrf.mxu0
    %v1140 = vpop.f32.mrf.mxu0
    %1141 = vdwg.mxu0
    %1142 = vst [vmem:[#allocation10] sm:$0xff] %v1137
    // Predicated region
    $region42: #{tpu_custom_call.1} parent=1 // pred_check
      _
    $region43: #{tpu_custom_call.1} parent=1 // pred_check_branch
      %1144 = sbr.rel (0) target = $region45
    $region44: #{tpu_custom_call.1} parent=1 // pred_region
      %s1146 = ssub.s32 128, 128
      %1147 = vsyncadd [#allocation4], %s1146
      %s1149 = sshll.u32 [#allocation10], 4
      %s1150 = int_to_ptr.vmem [resolvable:$true] %s1149
      %1152 = dma.vmem_to_hbm [thread:$0]  %s1150, 128, %s6, [#allocation4]
    $region45: #{tpu_custom_call.1} parent=1 // pred_fallthru
      _
    // Predicated region
    $region46: #{tpu_custom_call.1} parent=1 // pred_check
      _
    $region47: #{tpu_custom_call.1} parent=1 // pred_check_branch
      %1154 = sbr.rel (0) target = $region49
    $region48: #{tpu_custom_call.1} parent=1 // pred_region
      %1155 = dma.done [#allocation4], 128
    $region49: #{tpu_custom_call.1} parent=1 // pred_fallthru
      _
    %1156 = vsyncpa [#allocation3], 1
    %1157 = vsyncpa [#allocation6], 1
    %1158 = vsyncpa [#allocation9], 1
    %1159 = vsyncpa [#allocation4], 1

</llo_original>
